<compile_context>
chip_gen: v6e
topology: v6e:2x2x1
jax: 0.10.0
libtpu: 0.0.40
codegen_flags: <defaults>
</compile_context>

<pallas_src>
import jax
import jax.numpy as jnp
from jax.experimental import pallas as pl
from jax.experimental.pallas import tpu as pltpu

HIDDEN = 100          # logical hidden size (PyTorch default)
SUBSPACE = 200        # logical subspace dim (PyTorch default)
HIDDEN_PAD = 128      # lane/MXU-aligned padded hidden size (K of the matmul)
SUBSPACE_PAD = 256    # sublane-aligned padded subspace dim
MAX_B_TILE = 1024     # upper bound on rows (lanes) per grid step


def mlp_kernel(x_ref, w1_ref, b1_ref, w2t_ref, b2_ref, o_ref):
    # Batch-in-lanes layout: x tile is (1, Bt), batch lives on lanes.
    x = x_ref[...]                                                    # (1, Bt)

    # Layer 1 (Linear(1,H)): K=1 contraction == rank-1 outer product on the
    # VPU.  (H,1) * (1,Bt) + (H,1)  ->  (H, Bt), features on sublanes.
    h1 = jnp.tanh(w1_ref[...] * x + b1_ref[...])                      # (H, Bt)

    # Layer 2 (Linear(H,S)): the only real matmul -> MXU, f32 accumulation.
    # Weights are stored pre-transposed as (S, H): (S,H) @ (H,Bt) -> (S,Bt).
    h2 = jnp.tanh(
        jnp.dot(w2t_ref[...], h1, preferred_element_type=jnp.float32)
        + b2_ref[...]
    )                                                                 # (S, Bt)

    # Layer 3 (Linear(S,1), bias=False, weight filled with 1.0): padded rows
    # of h2 are exactly tanh(0)=0, so the layer collapses to a sublane sum.
    o_ref[...] = jnp.sum(h2, axis=0, keepdims=True)                   # (1, Bt)


def _choose_block(B, max_block=MAX_B_TILE, min_block=128):
    """Lane-dense batch tile: multiple of 128, >=2 tiles when B>128 so the
    'parallel' batch axis can be split across v7x's two TensorCores."""
    if B <= min_block:
        return min_block
    half = -(-B // 2)
    blk = ((half + 127) // 128) * 128
    return max(min_block, min(blk, max_block))


def net_forward(x, w1_col, b1_col, w2t, b2_col, *, max_block=MAX_B_TILE):
    """x: (B, 1) float32.
    Kernel params (zero-padded, batch-in-lanes layout):
      w1_col, b1_col: (HIDDEN_PAD, 1); w2t: (SUBSPACE_PAD, HIDDEN_PAD) (= w2^T);
      b2_col: (SUBSPACE_PAD, 1).  Returns (B, 1)."""
    B = x.shape[0]
    blk = _choose_block(B, max_block)
    n_tiles = -(-B // blk)
    Bp = n_tiles * blk

    xf = x.reshape(-1)
    if Bp != B:
        xf = jnp.pad(xf, (0, Bp - B))      # padded rows are sliced off below
    x_row = xf.reshape(1, Bp)              # lane-dense: batch on lanes

    H = w1_col.shape[0]
    S = w2t.shape[0]

    out = pl.pallas_call(
        mlp_kernel,
        out_shape=jax.ShapeDtypeStruct((1, Bp), jnp.float32),
        grid_spec=pltpu.PrefetchScalarGridSpec(
            num_scalar_prefetch=0,
            grid=(n_tiles,),
            in_specs=[
                # x streams as lane-dense (1, blk) tiles
                pl.BlockSpec((1, blk), lambda i: (0, i)),
                # weights: constant block index -> resident in VMEM across steps
                pl.BlockSpec((H, 1), lambda i: (0, 0)),      # w1 (column)
                pl.BlockSpec((H, 1), lambda i: (0, 0)),      # b1 (column)
                pl.BlockSpec((S, H), lambda i: (0, 0)),      # w2^T
                pl.BlockSpec((S, 1), lambda i: (0, 0)),      # b2 (column)
            ],
            out_specs=pl.BlockSpec((1, blk), lambda i: (0, i)),
        ),
        compiler_params=pltpu.CompilerParams(
            dimension_semantics=("parallel",),   # v7x: split batch tiles across 2 TCs
        ),
    )(x_row, w1_col, b1_col, w2t, b2_col)

    return out.reshape(Bp, 1)[:B]


def init_params(key, hidden_size=HIDDEN, subspace_dim=SUBSPACE,
                hidden_pad=HIDDEN_PAD, subspace_pad=SUBSPACE_PAD):
    """Mimics nn.Linear's U(-1/sqrt(fan_in), 1/sqrt(fan_in)) init.
    Returns (padded batch-in-lanes params for the kernel,
             unpadded row-major params for the plain-JAX reference).
    Padded entries are exactly zero, so the padded forward equals the logical one."""
    k1, k2, k3, k4 = jax.random.split(key, 4)
    lim1 = 1.0                                   # fan_in = 1
    lim2 = 1.0 / jnp.sqrt(float(hidden_size))
    w1 = jax.random.uniform(k1, (1, hidden_size), jnp.float32, -lim1, lim1)
    b1 = jax.random.uniform(k2, (1, hidden_size), jnp.float32, -lim1, lim1)
    w2 = jax.random.uniform(k3, (hidden_size, subspace_dim), jnp.float32, -lim2, lim2)
    b2 = jax.random.uniform(k4, (1, subspace_dim), jnp.float32, -lim2, lim2)
    w3 = jnp.ones((1, subspace_dim), jnp.float32)   # output weight fill_(1.0), no bias

    # Kernel layout: features on sublanes (columns), w2 pre-transposed to (S, H).
    w1_col = jnp.zeros((hidden_pad, 1), jnp.float32).at[:hidden_size, 0].set(w1[0])
    b1_col = jnp.zeros((hidden_pad, 1), jnp.float32).at[:hidden_size, 0].set(b1[0])
    w2t = (jnp.zeros((subspace_pad, hidden_pad), jnp.float32)
           .at[:subspace_dim, :hidden_size].set(w2.T))
    b2_col = jnp.zeros((subspace_pad, 1), jnp.float32).at[:subspace_dim, 0].set(b2[0])
    return (w1_col, b1_col, w2t, b2_col), (w1, b1, w2, b2, w3)


if __name__ == "__main__":
    batch = 384   # -> block 256, two lane-dense tiles + a padded remainder

    key = jax.random.PRNGKey(0)
    kx, kp = jax.random.split(key)
    x = jax.random.normal(kx, (batch, 1), jnp.float32)
    (w1c, b1c, w2t, b2c), (w1, b1, w2, b2, w3) = init_params(kp)

    out = net_forward(x, w1c, b1c, w2t, b2c)
    out = jax.block_until_ready(out)

    # plain-JAX reference on the unpadded parameters (w3 = 1.0 output layer)
    ref = jnp.tanh(x @ w1 + b1)
    ref = jnp.tanh(ref @ w2 + b2)
    ref = ref @ w3.T                             # (B, 1)

    assert out.shape == (batch, 1)
    assert jnp.allclose(out, ref, atol=1e-5, rtol=1e-5)

    print("KERNEL_OK")
</pallas_src>

<mosaic_0001>
module attributes {stable_mosaic.version = 11 : i64} {
  func.func @mlp_kernel(%arg0: i32, %arg1: memref<1x256xf32, #tpu.memory_space<vmem>>, %arg2: memref<128x1xf32, #tpu.memory_space<vmem>>, %arg3: memref<128x1xf32, #tpu.memory_space<vmem>>, %arg4: memref<256x128xf32, #tpu.memory_space<vmem>>, %arg5: memref<256x1xf32, #tpu.memory_space<vmem>>, %arg6: memref<1x256xf32, #tpu.memory_space<vmem>>) attributes {dimension_semantics = [#tpu.dimension_semantics<parallel>], iteration_bounds = array<i64: 2>, scalar_prefetch = 0 : i64, scratch_operands = 0 : i64, tpu.core_type = #tpu.core_type<tc>, window_params = [{transform_indices = @transform_0, window_bounds = array<i64: 1, 256>}, {pipeline_mode = #tpu.pipeline_mode<synchronous>, transform_indices = @transform_1, window_bounds = array<i64: 128, 1>}, {pipeline_mode = #tpu.pipeline_mode<synchronous>, transform_indices = @transform_2, window_bounds = array<i64: 128, 1>}, {pipeline_mode = #tpu.pipeline_mode<synchronous>, transform_indices = @transform_3, window_bounds = array<i64: 256, 128>}, {pipeline_mode = #tpu.pipeline_mode<synchronous>, transform_indices = @transform_4, window_bounds = array<i64: 256, 1>}, {transform_indices = @transform_5, window_bounds = array<i64: 1, 256>}]} {
    %c0 = arith.constant 0 : index
    %c0_0 = arith.constant 0 : index
    %0 = vector.load %arg1[%c0, %c0_0] : memref<1x256xf32, #tpu.memory_space<vmem>>, vector<1x256xf32>
    %c0_1 = arith.constant 0 : index
    %c0_2 = arith.constant 0 : index
    %1 = vector.load %arg2[%c0_1, %c0_2] : memref<128x1xf32, #tpu.memory_space<vmem>>, vector<128x1xf32>
    %2 = vector.broadcast %1 : vector<128x1xf32> to vector<128x256xf32>
    %3 = vector.broadcast %0 : vector<1x256xf32> to vector<128x256xf32>
    %4 = arith.mulf %2, %3 : vector<128x256xf32>
    %c0_3 = arith.constant 0 : index
    %c0_4 = arith.constant 0 : index
    %5 = vector.load %arg3[%c0_3, %c0_4] : memref<128x1xf32, #tpu.memory_space<vmem>>, vector<128x1xf32>
    %6 = vector.broadcast %5 : vector<128x1xf32> to vector<128x256xf32>
    %7 = arith.addf %4, %6 : vector<128x256xf32>
    %8 = math.tanh %7 : vector<128x256xf32>
    %c0_5 = arith.constant 0 : index
    %c0_6 = arith.constant 0 : index
    %9 = vector.load %arg4[%c0_5, %c0_6] : memref<256x128xf32, #tpu.memory_space<vmem>>, vector<256x128xf32>
    %cst = arith.constant dense<0.000000e+00> : vector<256x256xf32>
    %10 = tpu.matmul %9, %8, %cst {dimension_numbers = #tpu.dot_dimension_numbers<[1], [0], [0], [1], [0, 0, 1, 1], [], []>} : vector<256x128xf32>, vector<128x256xf32>, vector<256x256xf32> -> vector<256x256xf32>
    %c0_7 = arith.constant 0 : index
    %c0_8 = arith.constant 0 : index
    %11 = vector.load %arg5[%c0_7, %c0_8] : memref<256x1xf32, #tpu.memory_space<vmem>>, vector<256x1xf32>
    %12 = vector.broadcast %11 : vector<256x1xf32> to vector<256x256xf32>
    %13 = arith.addf %10, %12 : vector<256x256xf32>
    %14 = math.tanh %13 : vector<256x256xf32>
    %cst_9 = arith.constant dense<0.000000e+00> : vector<256xf32>
    %15 = vector.multi_reduction <add>, %14, %cst_9 [0] : vector<256x256xf32> to vector<256xf32>
    %16 = vector.shape_cast %15 : vector<256xf32> to vector<1x256xf32>
    %c0_10 = arith.constant 0 : index
    %c0_11 = arith.constant 0 : index
    %17 = vector.load %arg6[%c0_10, %c0_11] : memref<1x256xf32, #tpu.memory_space<vmem>>, vector<1x256xf32>
    tpu.vector_store %arg6[%c0_10, %c0_11], %16 {strides = array<i32>} : memref<1x256xf32, #tpu.memory_space<vmem>>, vector<1x256xf32>,
    return
  }
  func.func @transform_0(%arg0: i32) -> (i32, i32) {
    %c0_i32 = arith.constant 0 : i32
    %c0_i32_0 = arith.constant 0 : i32
    return %c0_i32, %arg0 : i32, i32
  }
  func.func @transform_1(%arg0: i32) -> (i32, i32) {
    %c0_i32 = arith.constant 0 : i32
    %c0_i32_0 = arith.constant 0 : i32
    %c0_i32_1 = arith.constant 0 : i32
    return %c0_i32, %c0_i32_0 : i32, i32
  }
  func.func @transform_2(%arg0: i32) -> (i32, i32) {
    %c0_i32 = arith.constant 0 : i32
    %c0_i32_0 = arith.constant 0 : i32
    %c0_i32_1 = arith.constant 0 : i32
    return %c0_i32, %c0_i32_0 : i32, i32
  }
  func.func @transform_3(%arg0: i32) -> (i32, i32) {
    %c0_i32 = arith.constant 0 : i32
    %c0_i32_0 = arith.constant 0 : i32
    %c0_i32_1 = arith.constant 0 : i32
    return %c0_i32, %c0_i32_0 : i32, i32
  }
  func.func @transform_4(%arg0: i32) -> (i32, i32) {
    %c0_i32 = arith.constant 0 : i32
    %c0_i32_0 = arith.constant 0 : i32
    %c0_i32_1 = arith.constant 0 : i32
    return %c0_i32, %c0_i32_0 : i32, i32
  }
  func.func @transform_5(%arg0: i32) -> (i32, i32) {
    %c0_i32 = arith.constant 0 : i32
    %c0_i32_0 = arith.constant 0 : i32
    return %c0_i32, %arg0 : i32, i32
  }
}

</mosaic_0001>

<llo_original>
// kernel: tpu_custom_call.1
$region0: #{tpu_custom_call.1}
  #allocation0 [shape = 'u32[]', space=smem, size = 0x4, offset = 0x4, fixed_abs, tag = 'smem constant byte address 0x4 - core index']
  #allocation1 [shape = 'u32[144,128]{1,0:T(1,128)}', space=vmem, size = 0x12000, scoped, tag = 'internal scratch']
  %s0 = inlined_call_operand.vmem [shape: f32[1,512], index: 0, kind: input, shape index: {}]
  %s1 = inlined_call_operand.vmem [shape: f32[128,1], index: 1, kind: input, shape index: {}]
  %s2 = inlined_call_operand.vmem [shape: f32[128,1], index: 2, kind: input, shape index: {}]
  %s3 = inlined_call_operand.vmem [shape: f32[256,128], index: 3, kind: input, shape index: {}]
  %s4 = inlined_call_operand.vmem [shape: f32[256,1], index: 4, kind: input, shape index: {}]
  %s5 = inlined_call_operand.hbm [shape: f32[1,512], index: 5, kind: output, shape index: {}]
  %s6 = sld [smem:[#allocation0]]
  $region53: #{tpu_custom_call.1} parent=0
    _
  %s8 = ssub.s32 1, %s6
  %s9 = scalar_select 0, %s8, %s6
  $region1: #{tpu_custom_call.1} parent=0
    #allocation2 [shape = 'u8[2048]{0}', space=vmem, size = 0x800, scoped, tag = 'output window, operand 0']
    #allocation3 [shape = 's32[2]{0}', space=sflag, size = 0x8, scoped, tag = 'scoped memory for tpu_custom_call.1']
    %10 = vsyncpa [#allocation3], 0
    %s11 = scalar_lea.sflag [#allocation3], 1
    %12 = vsyncpa %s11, 0
    loop: start=0, step=1, limit=4
    $region2: #{tpu_custom_call.1} parent=1 // loop_pre_header
      _
    $region3: #{tpu_custom_call.1} parent=1 // loop_header
      %s14 = sphi 0, %s18
      %p15 = scmp.ge.s32.totalorder %s14, 4
      %s24 = sphi 0, %s26
      %s27 = sphi 0, %s24
      %s28 = sphi 0, %s27
      %s44 = sphi 0, %s28
      %s48 = sphi 0, %s48
      %s50 = sphi 0, %s48
      %s51 = sphi 0, %s50
      %s65 = sphi 0, %s51
      %s69 = sphi 0, %s69
      %s71 = sphi 0, %s69
      %s72 = sphi 0, %s71
      %s86 = sphi 0, %s72
      %s90 = sphi 0, %s90
      %s92 = sphi 0, %s90
      %s93 = sphi 0, %s92
      %s107 = sphi 0, %s93
      %s111 = sphi 0, %s111
      %s113 = sphi 0, %s111
      %s114 = sphi 0, %s113
      %s128 = sphi 0, %s114
      %s134 = sphi 0, %s136
      %s137 = sphi 0, %s134
      %s138 = sphi 0, %s137
      %s154 = sphi 0, %s138
    $region4: #{tpu_custom_call.1} parent=1 // loop_header_branch
      %17 = sbr.rel (%p15) target = $region8
    $region5: #{tpu_custom_call.1} parent=1 // loop_body
      %s19 = ssub.s32 %s14, 1
      %s20 = ssub.s32 %s14, 2
      %s21 = sadd.s32 %s14, 1
      %s22 = ssub.s32 %s14, %s21
      %p23 = scmp.eq.s32.totalorder %s22, 0
      %s25 = sadd.s32 %s24, 1
      %s26 = scalar_select %p23, %s24, %s25
      %p29 = pneg %p23
      %p30 = scmp.eq.s32.totalorder %s14, 1
      %p31 = por %p29, %p30
      %p32 = scmp.ne.s32.totalorder %s24, %s27
      %p33 = scmp.eq.s32.totalorder %s14, 0
      %p34 = por %p32, %p33
      %p35 = scmp.ne.s32.totalorder %s24, %s27
      %p36 = scmp.eq.s32.totalorder %s19, 1
      %p37 = por %p35, %p36
      %p38 = scmp.ne.s32.totalorder %s27, %s28
      %p39 = scmp.eq.s32.totalorder %s19, 0
      %p40 = por %p38, %p39
      %p41 = scmp.ne.s32.totalorder %s27, %s28
      %p42 = scmp.eq.s32.totalorder %s20, 1
      %p43 = por %p41, %p42
      %p45 = scmp.ne.s32.totalorder %s28, %s44
      %p46 = scmp.eq.s32.totalorder %s20, 0
      %p47 = por %p45, %p46
      %s49 = sadd.s32 %s48, 1
      %p52 = scmp.eq.s32.totalorder %s14, 1
      %p53 = scmp.ne.s32.totalorder %s48, %s50
      %p54 = scmp.eq.s32.totalorder %s14, 0
      %p55 = por %p53, %p54
      %p56 = scmp.ne.s32.totalorder %s48, %s50
      %p57 = scmp.eq.s32.totalorder %s19, 1
      %p58 = por %p56, %p57
      %p59 = scmp.ne.s32.totalorder %s50, %s51
      %p60 = scmp.eq.s32.totalorder %s19, 0
      %p61 = por %p59, %p60
      %p62 = scmp.ne.s32.totalorder %s50, %s51
      %p63 = scmp.eq.s32.totalorder %s20, 1
      %p64 = por %p62, %p63
      %p66 = scmp.ne.s32.totalorder %s51, %s65
      %p67 = scmp.eq.s32.totalorder %s20, 0
      %p68 = por %p66, %p67
      %s70 = sadd.s32 %s69, 1
      %p73 = scmp.eq.s32.totalorder %s14, 1
      %p74 = scmp.ne.s32.totalorder %s69, %s71
      %p75 = scmp.eq.s32.totalorder %s14, 0
      %p76 = por %p74, %p75
      %p77 = scmp.ne.s32.totalorder %s69, %s71
      %p78 = scmp.eq.s32.totalorder %s19, 1
      %p79 = por %p77, %p78
      %p80 = scmp.ne.s32.totalorder %s71, %s72
      %p81 = scmp.eq.s32.totalorder %s19, 0
      %p82 = por %p80, %p81
      %p83 = scmp.ne.s32.totalorder %s71, %s72
      %p84 = scmp.eq.s32.totalorder %s20, 1
      %p85 = por %p83, %p84
      %p87 = scmp.ne.s32.totalorder %s72, %s86
      %p88 = scmp.eq.s32.totalorder %s20, 0
      %p89 = por %p87, %p88
      %s91 = sadd.s32 %s90, 1
      %p94 = scmp.eq.s32.totalorder %s14, 1
      %p95 = scmp.ne.s32.totalorder %s90, %s92
      %p96 = scmp.eq.s32.totalorder %s14, 0
      %p97 = por %p95, %p96
      %p98 = scmp.ne.s32.totalorder %s90, %s92
      %p99 = scmp.eq.s32.totalorder %s19, 1
      %p100 = por %p98, %p99
      %p101 = scmp.ne.s32.totalorder %s92, %s93
      %p102 = scmp.eq.s32.totalorder %s19, 0
      %p103 = por %p101, %p102
      %p104 = scmp.ne.s32.totalorder %s92, %s93
      %p105 = scmp.eq.s32.totalorder %s20, 1
      %p106 = por %p104, %p105
      %p108 = scmp.ne.s32.totalorder %s93, %s107
      %p109 = scmp.eq.s32.totalorder %s20, 0
      %p110 = por %p108, %p109
      %s112 = sadd.s32 %s111, 1
      %p115 = scmp.eq.s32.totalorder %s14, 1
      %p116 = scmp.ne.s32.totalorder %s111, %s113
      %p117 = scmp.eq.s32.totalorder %s14, 0
      %p118 = por %p116, %p117
      %p119 = scmp.ne.s32.totalorder %s111, %s113
      %p120 = scmp.eq.s32.totalorder %s19, 1
      %p121 = por %p119, %p120
      %p122 = scmp.ne.s32.totalorder %s113, %s114
      %p123 = scmp.eq.s32.totalorder %s19, 0
      %p124 = por %p122, %p123
      %p125 = scmp.ne.s32.totalorder %s113, %s114
      %p126 = scmp.eq.s32.totalorder %s20, 1
      %p127 = por %p125, %p126
      %p129 = scmp.ne.s32.totalorder %s114, %s128
      %p130 = scmp.eq.s32.totalorder %s20, 0
      %p131 = por %p129, %p130
      %s132 = ssub.s32 %s14, %s21
      %p133 = scmp.eq.s32.totalorder %s132, 0
      %s135 = sadd.s32 %s134, 1
      %s136 = scalar_select %p133, %s134, %s135
      %p139 = pneg %p133
      %p140 = scmp.eq.s32.totalorder %s14, 1
      %p141 = por %p139, %p140
      %p142 = scmp.ne.s32.totalorder %s134, %s137
      %p143 = scmp.eq.s32.totalorder %s14, 0
      %p144 = por %p142, %p143
      %p145 = scmp.ne.s32.totalorder %s134, %s137
      %p146 = scmp.eq.s32.totalorder %s19, 1
      %p147 = por %p145, %p146
      %p148 = scmp.ne.s32.totalorder %s137, %s138
      %p149 = scmp.eq.s32.totalorder %s19, 0
      %p150 = por %p148, %p149
      %p151 = scmp.ne.s32.totalorder %s137, %s138
      %p152 = scmp.eq.s32.totalorder %s20, 1
      %p153 = por %p151, %p152
      %p155 = scmp.ne.s32.totalorder %s138, %s154
      %p156 = scmp.eq.s32.totalorder %s20, 0
      %p157 = por %p155, %p156
      %p158 = scmp.le.s32.totalorder 1, %s14
      %p159 = scmp.lt.s32.totalorder %s14, 3
      %p160 = pnand %p158, %p159
      %p161 = pneg %p160
      // Predicated region
      $region9: #{tpu_custom_call.1} parent=5 // pred_check
        _
      $region10: #{tpu_custom_call.1} parent=5 // pred_check_branch
        %163 = sbr.rel (%p160) target = $region12
      $region11: #{tpu_custom_call.1} parent=5 // pred_region
        %s164 = ssub.s32 %s14, 1
        // Predicated region
        $region13: #{tpu_custom_call.1} parent=11 // pred_check
          %p165 = pneg %p61
        $region14: #{tpu_custom_call.1} parent=11 // pred_check_branch
          %167 = sbr.rel (%p165) target = $region16
        $region15: #{tpu_custom_call.1} parent=11 // pred_region
          _
        $region16: #{tpu_custom_call.1} parent=11 // pred_fallthru
          _
        // Predicated region
        $region17: #{tpu_custom_call.1} parent=11 // pred_check
          %p168 = pneg %p82
        $region18: #{tpu_custom_call.1} parent=11 // pred_check_branch
          %170 = sbr.rel (%p168) target = $region20
        $region19: #{tpu_custom_call.1} parent=11 // pred_region
          _
        $region20: #{tpu_custom_call.1} parent=11 // pred_fallthru
          _
        // Predicated region
        $region21: #{tpu_custom_call.1} parent=11 // pred_check
          %p171 = pneg %p103
        $region22: #{tpu_custom_call.1} parent=11 // pred_check_branch
          %173 = sbr.rel (%p171) target = $region24
        $region23: #{tpu_custom_call.1} parent=11 // pred_region
          _
        $region24: #{tpu_custom_call.1} parent=11 // pred_fallthru
          _
        // Predicated region
        $region25: #{tpu_custom_call.1} parent=11 // pred_check
          %p174 = pneg %p124
        $region26: #{tpu_custom_call.1} parent=11 // pred_check_branch
          %176 = sbr.rel (%p174) target = $region28
        $region27: #{tpu_custom_call.1} parent=11 // pred_region
          _
        $region28: #{tpu_custom_call.1} parent=11 // pred_fallthru
          _
      $region12: #{tpu_custom_call.1} parent=5 // pred_fallthru
        _
      %p177 = scmp.lt.s32.totalorder %s14, 2
      // Predicated region
      $region29: #{tpu_custom_call.1} parent=5 // pred_check
        %p178 = pneg %p177
      $region30: #{tpu_custom_call.1} parent=5 // pred_check_branch
        %180 = sbr.rel (%p178) target = $region32
      $region31: #{tpu_custom_call.1} parent=5 // pred_region
        // Predicated region
        $region33: #{tpu_custom_call.1} parent=31 // pred_check
          %p181 = pneg %p34
        $region34: #{tpu_custom_call.1} parent=31 // pred_check_branch
          %183 = sbr.rel (%p181) target = $region36
        $region35: #{tpu_custom_call.1} parent=31 // pred_region
          %s184 = smul.u32 2, %s14
          %p185 = scmp.lt.s32.totalorder %s184, 3
          %s186 = scalar_select %p185, %s184, 3
          %s187 = scalar_lea.vmem %s0, %s186
          %s188 = smul.u32 2, %s14
        $region36: #{tpu_custom_call.1} parent=31 // pred_fallthru
          _
      $region32: #{tpu_custom_call.1} parent=5 // pred_fallthru
        _
      %p189 = scmp.le.s32.totalorder 1, %s14
      %p190 = scmp.lt.s32.totalorder %s14, 3
      %p191 = pnand %p189, %p190
      %p192 = pneg %p191
      // Predicated region
      $region37: #{tpu_custom_call.1} parent=5 // pred_check
        _
      $region38: #{tpu_custom_call.1} parent=5 // pred_check_branch
        %194 = sbr.rel (%p191) target = $region40
      $region39: #{tpu_custom_call.1} parent=5 // pred_region
        %s195 = ssub.s32 %s14, 1
        %s196 = smul.u32 2, %s19
        %p197 = scmp.lt.s32.totalorder %s196, 3
        %s198 = scalar_select %p197, %s196, 3
        %s199 = scalar_lea.vmem %s0, %s198
        %p200 = pneg %p40
        %p201 = pneg %p37
        %p202 = pneg %p61
        %p203 = pneg %p58
        %p204 = pneg %p82
        %p205 = pneg %p79
        %p206 = pneg %p103
        %p207 = pneg %p100
        %p208 = pneg %p124
        %p209 = pneg %p121
        %p210 = pneg %p150
        %p211 = pneg %p147
        %s212 = sand.u32 %s137, 1
        %s213 = scalar_lea.sflag [#allocation3], %s212
        %s214 = sand.u32 %s137, 1
        %s215 = smul.addr %s214, 2
        %s216 = scalar_lea.vmem [#allocation2], %s215
        %s217 = smul.u32 2, %s19
        %p218 = scmp.lt.s32.totalorder %s217, 3
        %s219 = scalar_select %p218, %s217, 3
        %s220 = scalar_lea.vmem %s0, %s219
        %s221 = smul.u32 2, %s19
        %s222 = smul.u32 2, %s19
        %v223 = vld [vmem:[%s220] sm:$0x3]
        %v224 = vld [vmem:[%s1] sm:$0xff]
        %v225 = vld [vmem:[%s1 + $0x8] sm:$0xff]
        %v226 = vld [vmem:[%s1 + $0x10] sm:$0xff]
        %v227 = vld [vmem:[%s1 + $0x18] sm:$0xff]
        %v228 = vld [vmem:[%s1 + $0x20] sm:$0xff]
        %v229 = vld [vmem:[%s1 + $0x28] sm:$0xff]
        %v230 = vld [vmem:[%s1 + $0x30] sm:$0xff]
        %v231 = vld [vmem:[%s1 + $0x38] sm:$0xff]
        %v232 = vld [vmem:[%s1 + $0x40] sm:$0xff]
        %v233 = vld [vmem:[%s1 + $0x48] sm:$0xff]
        %v234 = vld [vmem:[%s1 + $0x50] sm:$0xff]
        %v235 = vld [vmem:[%s1 + $0x58] sm:$0xff]
        %v236 = vld [vmem:[%s1 + $0x60] sm:$0xff]
        %v237 = vld [vmem:[%s1 + $0x68] sm:$0xff]
        %v238 = vld [vmem:[%s1 + $0x70] sm:$0xff]
        %v239 = vld [vmem:[%s1 + $0x78] sm:$0xff]
        %241 = vset.pattern.permute.xlu0 0
        %242 = vperm.xlu0 %241, %v224
        %v243 = vpop.permute.xlu0 %242
        %246 = vset.pattern.permute.xlu0 0
        %247 = vperm.xlu0 %246, %v225
        %v248 = vpop.permute.xlu0 %247
        %251 = vset.pattern.permute.xlu0 0
        %252 = vperm.xlu0 %251, %v226
        %v253 = vpop.permute.xlu0 %252
        %256 = vset.pattern.permute.xlu0 0
        %257 = vperm.xlu0 %256, %v227
        %v258 = vpop.permute.xlu0 %257
        %261 = vset.pattern.permute.xlu0 0
        %262 = vperm.xlu0 %261, %v228
        %v263 = vpop.permute.xlu0 %262
        %266 = vset.pattern.permute.xlu0 0
        %267 = vperm.xlu0 %266, %v229
        %v268 = vpop.permute.xlu0 %267
        %271 = vset.pattern.permute.xlu0 0
        %272 = vperm.xlu0 %271, %v230
        %v273 = vpop.permute.xlu0 %272
        %276 = vset.pattern.permute.xlu0 0
        %277 = vperm.xlu0 %276, %v231
        %v278 = vpop.permute.xlu0 %277
        %281 = vset.pattern.permute.xlu0 0
        %282 = vperm.xlu0 %281, %v232
        %v283 = vpop.permute.xlu0 %282
        %286 = vset.pattern.permute.xlu0 0
        %287 = vperm.xlu0 %286, %v233
        %v288 = vpop.permute.xlu0 %287
        %291 = vset.pattern.permute.xlu0 0
        %292 = vperm.xlu0 %291, %v234
        %v293 = vpop.permute.xlu0 %292
        %296 = vset.pattern.permute.xlu0 0
        %297 = vperm.xlu0 %296, %v235
        %v298 = vpop.permute.xlu0 %297
        %301 = vset.pattern.permute.xlu0 0
        %302 = vperm.xlu0 %301, %v236
        %v303 = vpop.permute.xlu0 %302
        %306 = vset.pattern.permute.xlu0 0
        %307 = vperm.xlu0 %306, %v237
        %v308 = vpop.permute.xlu0 %307
        %311 = vset.pattern.permute.xlu0 0
        %312 = vperm.xlu0 %311, %v238
        %v313 = vpop.permute.xlu0 %312
        %316 = vset.pattern.permute.xlu0 0
        %317 = vperm.xlu0 %316, %v239
        %v318 = vpop.permute.xlu0 %317
        %v321 = vlaneseq
        %v322 = vshrl.u32 %v321, 7
        %v323 = vsub.s32 0, %v322
        %v324 = vrot.slane %v223, %v323
        %v325 = vlaneseq
        %v326 = vshrl.u32 %v325, 7
        %v327 = vsub.s32 1, %v326
        %v328 = vrot.slane %v223, %v327
        %v331 = vmul.f32 %v243, %v324
        %v332 = vmul.f32 %v243, %v328
        %v333 = vmul.f32 %v248, %v324
        %v334 = vmul.f32 %v248, %v328
        %v335 = vmul.f32 %v253, %v324
        %v336 = vmul.f32 %v253, %v328
        %v337 = vmul.f32 %v258, %v324
        %v338 = vmul.f32 %v258, %v328
        %v339 = vmul.f32 %v263, %v324
        %v340 = vmul.f32 %v263, %v328
        %v341 = vmul.f32 %v268, %v324
        %v342 = vmul.f32 %v268, %v328
        %v343 = vmul.f32 %v273, %v324
        %v344 = vmul.f32 %v273, %v328
        %v345 = vmul.f32 %v278, %v324
        %v346 = vmul.f32 %v278, %v328
        %v347 = vmul.f32 %v283, %v324
        %v348 = vmul.f32 %v283, %v328
        %v349 = vmul.f32 %v288, %v324
        %v350 = vmul.f32 %v288, %v328
        %v351 = vmul.f32 %v293, %v324
        %v352 = vmul.f32 %v293, %v328
        %v353 = vmul.f32 %v298, %v324
        %v354 = vmul.f32 %v298, %v328
        %v355 = vmul.f32 %v303, %v324
        %v356 = vmul.f32 %v303, %v328
        %v357 = vmul.f32 %v308, %v324
        %v358 = vmul.f32 %v308, %v328
        %v359 = vmul.f32 %v313, %v324
        %v360 = vmul.f32 %v313, %v328
        %v361 = vmul.f32 %v318, %v324
        %v362 = vmul.f32 %v318, %v328
        %v363 = vld [vmem:[%s2] sm:$0xff]
        %v364 = vld [vmem:[%s2 + $0x8] sm:$0xff]
        %v365 = vld [vmem:[%s2 + $0x10] sm:$0xff]
        %v366 = vld [vmem:[%s2 + $0x18] sm:$0xff]
        %v367 = vld [vmem:[%s2 + $0x20] sm:$0xff]
        %v368 = vld [vmem:[%s2 + $0x28] sm:$0xff]
        %v369 = vld [vmem:[%s2 + $0x30] sm:$0xff]
        %v370 = vld [vmem:[%s2 + $0x38] sm:$0xff]
        %v371 = vld [vmem:[%s2 + $0x40] sm:$0xff]
        %v372 = vld [vmem:[%s2 + $0x48] sm:$0xff]
        %v373 = vld [vmem:[%s2 + $0x50] sm:$0xff]
        %v374 = vld [vmem:[%s2 + $0x58] sm:$0xff]
        %v375 = vld [vmem:[%s2 + $0x60] sm:$0xff]
        %v376 = vld [vmem:[%s2 + $0x68] sm:$0xff]
        %v377 = vld [vmem:[%s2 + $0x70] sm:$0xff]
        %v378 = vld [vmem:[%s2 + $0x78] sm:$0xff]
        %380 = vset.pattern.permute.xlu0 0
        %381 = vperm.xlu0 %380, %v363
        %v382 = vpop.permute.xlu0 %381
        %385 = vset.pattern.permute.xlu0 0
        %386 = vperm.xlu0 %385, %v364
        %v387 = vpop.permute.xlu0 %386
        %390 = vset.pattern.permute.xlu0 0
        %391 = vperm.xlu0 %390, %v365
        %v392 = vpop.permute.xlu0 %391
        %395 = vset.pattern.permute.xlu0 0
        %396 = vperm.xlu0 %395, %v366
        %v397 = vpop.permute.xlu0 %396
        %400 = vset.pattern.permute.xlu0 0
        %401 = vperm.xlu0 %400, %v367
        %v402 = vpop.permute.xlu0 %401
        %405 = vset.pattern.permute.xlu0 0
        %406 = vperm.xlu0 %405, %v368
        %v407 = vpop.permute.xlu0 %406
        %410 = vset.pattern.permute.xlu0 0
        %411 = vperm.xlu0 %410, %v369
        %v412 = vpop.permute.xlu0 %411
        %415 = vset.pattern.permute.xlu0 0
        %416 = vperm.xlu0 %415, %v370
        %v417 = vpop.permute.xlu0 %416
        %420 = vset.pattern.permute.xlu0 0
        %421 = vperm.xlu0 %420, %v371
        %v422 = vpop.permute.xlu0 %421
        %425 = vset.pattern.permute.xlu0 0
        %426 = vperm.xlu0 %425, %v372
        %v427 = vpop.permute.xlu0 %426
        %430 = vset.pattern.permute.xlu0 0
        %431 = vperm.xlu0 %430, %v373
        %v432 = vpop.permute.xlu0 %431
        %435 = vset.pattern.permute.xlu0 0
        %436 = vperm.xlu0 %435, %v374
        %v437 = vpop.permute.xlu0 %436
        %440 = vset.pattern.permute.xlu0 0
        %441 = vperm.xlu0 %440, %v375
        %v442 = vpop.permute.xlu0 %441
        %445 = vset.pattern.permute.xlu0 0
        %446 = vperm.xlu0 %445, %v376
        %v447 = vpop.permute.xlu0 %446
        %450 = vset.pattern.permute.xlu0 0
        %451 = vperm.xlu0 %450, %v377
        %v452 = vpop.permute.xlu0 %451
        %455 = vset.pattern.permute.xlu0 0
        %456 = vperm.xlu0 %455, %v378
        %v457 = vpop.permute.xlu0 %456
        %v459 = vadd.f32 %v331, %v382
        %v460 = vadd.f32 %v332, %v382
        %v461 = vadd.f32 %v333, %v387
        %v462 = vadd.f32 %v334, %v387
        %v463 = vadd.f32 %v335, %v392
        %v464 = vadd.f32 %v336, %v392
        %v465 = vadd.f32 %v337, %v397
        %v466 = vadd.f32 %v338, %v397
        %v467 = vadd.f32 %v339, %v402
        %v468 = vadd.f32 %v340, %v402
        %v469 = vadd.f32 %v341, %v407
        %v470 = vadd.f32 %v342, %v407
        %v471 = vadd.f32 %v343, %v412
        %v472 = vadd.f32 %v344, %v412
        %v473 = vadd.f32 %v345, %v417
        %v474 = vadd.f32 %v346, %v417
        %v475 = vadd.f32 %v347, %v422
        %v476 = vadd.f32 %v348, %v422
        %v477 = vadd.f32 %v349, %v427
        %v478 = vadd.f32 %v350, %v427
        %v479 = vadd.f32 %v351, %v432
        %v480 = vadd.f32 %v352, %v432
        %v481 = vadd.f32 %v353, %v437
        %v482 = vadd.f32 %v354, %v437
        %v483 = vadd.f32 %v355, %v442
        %v484 = vadd.f32 %v356, %v442
        %v485 = vadd.f32 %v357, %v447
        %v486 = vadd.f32 %v358, %v447
        %v487 = vadd.f32 %v359, %v452
        %v488 = vadd.f32 %v360, %v452
        %v489 = vadd.f32 %v361, %v457
        %v490 = vadd.f32 %v362, %v457
        %v491 = vtanh.pop %v459
        %v492 = vtanh.pop %v460
        %v493 = vtanh.pop %v461
        %v494 = vtanh.pop %v462
        %v495 = vtanh.pop %v463
        %v496 = vtanh.pop %v464
        %v497 = vtanh.pop %v465
        %v498 = vtanh.pop %v466
        %v499 = vtanh.pop %v467
        %v500 = vtanh.pop %v468
        %v501 = vtanh.pop %v469
        %v502 = vtanh.pop %v470
        %v503 = vtanh.pop %v471
        %v504 = vtanh.pop %v472
        %v505 = vtanh.pop %v473
        %v506 = vtanh.pop %v474
        %v507 = vtanh.pop %v475
        %v508 = vtanh.pop %v476
        %v509 = vtanh.pop %v477
        %v510 = vtanh.pop %v478
        %v511 = vtanh.pop %v479
        %v512 = vtanh.pop %v480
        %v513 = vtanh.pop %v481
        %v514 = vtanh.pop %v482
        %v515 = vtanh.pop %v483
        %v516 = vtanh.pop %v484
        %v517 = vtanh.pop %v485
        %v518 = vtanh.pop %v486
        %v519 = vtanh.pop %v487
        %v520 = vtanh.pop %v488
        %v521 = vtanh.pop %v489
        %v522 = vtanh.pop %v490
        %v523 = vld [vmem:[%s3] sm:$0xff]
        %v524 = vld [vmem:[%s3 + $0x8] sm:$0xff]
        %v525 = vld [vmem:[%s3 + $0x10] sm:$0xff]
        %v526 = vld [vmem:[%s3 + $0x18] sm:$0xff]
        %v527 = vld [vmem:[%s3 + $0x20] sm:$0xff]
        %v528 = vld [vmem:[%s3 + $0x28] sm:$0xff]
        %v529 = vld [vmem:[%s3 + $0x30] sm:$0xff]
        %v530 = vld [vmem:[%s3 + $0x38] sm:$0xff]
        %v531 = vld [vmem:[%s3 + $0x40] sm:$0xff]
        %v532 = vld [vmem:[%s3 + $0x48] sm:$0xff]
        %v533 = vld [vmem:[%s3 + $0x50] sm:$0xff]
        %v534 = vld [vmem:[%s3 + $0x58] sm:$0xff]
        %v535 = vld [vmem:[%s3 + $0x60] sm:$0xff]
        %v536 = vld [vmem:[%s3 + $0x68] sm:$0xff]
        %v537 = vld [vmem:[%s3 + $0x70] sm:$0xff]
        %v538 = vld [vmem:[%s3 + $0x78] sm:$0xff]
        %v539 = vld [vmem:[%s3 + $0x80] sm:$0xff]
        %v540 = vld [vmem:[%s3 + $0x88] sm:$0xff]
        %v541 = vld [vmem:[%s3 + $0x90] sm:$0xff]
        %v542 = vld [vmem:[%s3 + $0x98] sm:$0xff]
        %v543 = vld [vmem:[%s3 + $0xa0] sm:$0xff]
        %v544 = vld [vmem:[%s3 + $0xa8] sm:$0xff]
        %v545 = vld [vmem:[%s3 + $0xb0] sm:$0xff]
        %v546 = vld [vmem:[%s3 + $0xb8] sm:$0xff]
        %v547 = vld [vmem:[%s3 + $0xc0] sm:$0xff]
        %v548 = vld [vmem:[%s3 + $0xc8] sm:$0xff]
        %v549 = vld [vmem:[%s3 + $0xd0] sm:$0xff]
        %v550 = vld [vmem:[%s3 + $0xd8] sm:$0xff]
        %v551 = vld [vmem:[%s3 + $0xe0] sm:$0xff]
        %v552 = vld [vmem:[%s3 + $0xe8] sm:$0xff]
        %v553 = vld [vmem:[%s3 + $0xf0] sm:$0xff]
        %v554 = vld [vmem:[%s3 + $0xf8] sm:$0xff]
        %v555 = vld [vmem:[%s4] sm:$0xff]
        %v556 = vld [vmem:[%s4 + $0x8] sm:$0xff]
        %v557 = vld [vmem:[%s4 + $0x10] sm:$0xff]
        %v558 = vld [vmem:[%s4 + $0x18] sm:$0xff]
        %v559 = vld [vmem:[%s4 + $0x20] sm:$0xff]
        %v560 = vld [vmem:[%s4 + $0x28] sm:$0xff]
        %v561 = vld [vmem:[%s4 + $0x30] sm:$0xff]
        %v562 = vld [vmem:[%s4 + $0x38] sm:$0xff]
        %v563 = vld [vmem:[%s4 + $0x40] sm:$0xff]
        %v564 = vld [vmem:[%s4 + $0x48] sm:$0xff]
        %v565 = vld [vmem:[%s4 + $0x50] sm:$0xff]
        %v566 = vld [vmem:[%s4 + $0x58] sm:$0xff]
        %v567 = vld [vmem:[%s4 + $0x60] sm:$0xff]
        %v568 = vld [vmem:[%s4 + $0x68] sm:$0xff]
        %v569 = vld [vmem:[%s4 + $0x70] sm:$0xff]
        %v570 = vld [vmem:[%s4 + $0x78] sm:$0xff]
        %v571 = vld [vmem:[%s4 + $0x80] sm:$0xff]
        %v572 = vld [vmem:[%s4 + $0x88] sm:$0xff]
        %v573 = vld [vmem:[%s4 + $0x90] sm:$0xff]
        %v574 = vld [vmem:[%s4 + $0x98] sm:$0xff]
        %v575 = vld [vmem:[%s4 + $0xa0] sm:$0xff]
        %v576 = vld [vmem:[%s4 + $0xa8] sm:$0xff]
        %v577 = vld [vmem:[%s4 + $0xb0] sm:$0xff]
        %v578 = vld [vmem:[%s4 + $0xb8] sm:$0xff]
        %v579 = vld [vmem:[%s4 + $0xc0] sm:$0xff]
        %v580 = vld [vmem:[%s4 + $0xc8] sm:$0xff]
        %v581 = vld [vmem:[%s4 + $0xd0] sm:$0xff]
        %v582 = vld [vmem:[%s4 + $0xd8] sm:$0xff]
        %v583 = vld [vmem:[%s4 + $0xe0] sm:$0xff]
        %v584 = vld [vmem:[%s4 + $0xe8] sm:$0xff]
        %v585 = vld [vmem:[%s4 + $0xf0] sm:$0xff]
        %v586 = vld [vmem:[%s4 + $0xf8] sm:$0xff]
        %588 = vset.pattern.permute.xlu0 0
        %589 = vperm.xlu0 %588, %v555
        %v590 = vpop.permute.xlu0 %589
        %593 = vset.pattern.permute.xlu0 0
        %594 = vperm.xlu0 %593, %v556
        %v595 = vpop.permute.xlu0 %594
        %598 = vset.pattern.permute.xlu0 0
        %599 = vperm.xlu0 %598, %v557
        %v600 = vpop.permute.xlu0 %599
        %603 = vset.pattern.permute.xlu0 0
        %604 = vperm.xlu0 %603, %v558
        %v605 = vpop.permute.xlu0 %604
        %608 = vset.pattern.permute.xlu0 0
        %609 = vperm.xlu0 %608, %v559
        %v610 = vpop.permute.xlu0 %609
        %613 = vset.pattern.permute.xlu0 0
        %614 = vperm.xlu0 %613, %v560
        %v615 = vpop.permute.xlu0 %614
        %618 = vset.pattern.permute.xlu0 0
        %619 = vperm.xlu0 %618, %v561
        %v620 = vpop.permute.xlu0 %619
        %623 = vset.pattern.permute.xlu0 0
        %624 = vperm.xlu0 %623, %v562
        %v625 = vpop.permute.xlu0 %624
        %628 = vset.pattern.permute.xlu0 0
        %629 = vperm.xlu0 %628, %v563
        %v630 = vpop.permute.xlu0 %629
        %633 = vset.pattern.permute.xlu0 0
        %634 = vperm.xlu0 %633, %v564
        %v635 = vpop.permute.xlu0 %634
        %638 = vset.pattern.permute.xlu0 0
        %639 = vperm.xlu0 %638, %v565
        %v640 = vpop.permute.xlu0 %639
        %643 = vset.pattern.permute.xlu0 0
        %644 = vperm.xlu0 %643, %v566
        %v645 = vpop.permute.xlu0 %644
        %648 = vset.pattern.permute.xlu0 0
        %649 = vperm.xlu0 %648, %v567
        %v650 = vpop.permute.xlu0 %649
        %653 = vset.pattern.permute.xlu0 0
        %654 = vperm.xlu0 %653, %v568
        %v655 = vpop.permute.xlu0 %654
        %658 = vset.pattern.permute.xlu0 0
        %659 = vperm.xlu0 %658, %v569
        %v660 = vpop.permute.xlu0 %659
        %663 = vset.pattern.permute.xlu0 0
        %664 = vperm.xlu0 %663, %v570
        %v665 = vpop.permute.xlu0 %664
        %668 = vset.pattern.permute.xlu0 0
        %669 = vperm.xlu0 %668, %v571
        %v670 = vpop.permute.xlu0 %669
        %673 = vset.pattern.permute.xlu0 0
        %674 = vperm.xlu0 %673, %v572
        %v675 = vpop.permute.xlu0 %674
        %678 = vset.pattern.permute.xlu0 0
        %679 = vperm.xlu0 %678, %v573
        %v680 = vpop.permute.xlu0 %679
        %683 = vset.pattern.permute.xlu0 0
        %684 = vperm.xlu0 %683, %v574
        %v685 = vpop.permute.xlu0 %684
        %688 = vset.pattern.permute.xlu0 0
        %689 = vperm.xlu0 %688, %v575
        %v690 = vpop.permute.xlu0 %689
        %693 = vset.pattern.permute.xlu0 0
        %694 = vperm.xlu0 %693, %v576
        %v695 = vpop.permute.xlu0 %694
        %698 = vset.pattern.permute.xlu0 0
        %699 = vperm.xlu0 %698, %v577
        %v700 = vpop.permute.xlu0 %699
        %703 = vset.pattern.permute.xlu0 0
        %704 = vperm.xlu0 %703, %v578
        %v705 = vpop.permute.xlu0 %704
        %708 = vset.pattern.permute.xlu0 0
        %709 = vperm.xlu0 %708, %v579
        %v710 = vpop.permute.xlu0 %709
        %713 = vset.pattern.permute.xlu0 0
        %714 = vperm.xlu0 %713, %v580
        %v715 = vpop.permute.xlu0 %714
        %718 = vset.pattern.permute.xlu0 0
        %719 = vperm.xlu0 %718, %v581
        %v720 = vpop.permute.xlu0 %719
        %723 = vset.pattern.permute.xlu0 0
        %724 = vperm.xlu0 %723, %v582
        %v725 = vpop.permute.xlu0 %724
        %728 = vset.pattern.permute.xlu0 0
        %729 = vperm.xlu0 %728, %v583
        %v730 = vpop.permute.xlu0 %729
        %733 = vset.pattern.permute.xlu0 0
        %734 = vperm.xlu0 %733, %v584
        %v735 = vpop.permute.xlu0 %734
        %738 = vset.pattern.permute.xlu0 0
        %739 = vperm.xlu0 %738, %v585
        %v740 = vpop.permute.xlu0 %739
        %743 = vset.pattern.permute.xlu0 0
        %744 = vperm.xlu0 %743, %v586
        %v745 = vpop.permute.xlu0 %744
        %747 = vmatprep.subr.mxu0 %v522
        %748 = vmatpush1.msra.mxu0 %v521
        %749 = vmatprep.subr.mxu0 %v520
        %750 = vmatpush1.msra.mxu0 %v519
        %751 = vmatprep.subr.mxu0 %v518
        %752 = vmatpush1.msra.mxu0 %v517
        %753 = vmatprep.subr.mxu0 %v516
        %754 = vmatpush1.msra.mxu0 %v515
        %755 = vmatprep.subr.mxu0 %v514
        %756 = vmatpush1.msra.mxu0 %v513
        %757 = vmatprep.subr.mxu0 %v512
        %758 = vmatpush1.msra.mxu0 %v511
        %759 = vmatprep.subr.mxu0 %v510
        %760 = vmatpush1.msra.mxu0 %v509
        %761 = vmatprep.subr.mxu0 %v508
        %762 = vmatpush1.msra.mxu0 %v507
        %763 = vmatprep.subr.mxu0 %v506
        %764 = vmatpush1.msra.mxu0 %v505
        %765 = vmatprep.subr.mxu0 %v504
        %766 = vmatpush1.msra.mxu0 %v503
        %767 = vmatprep.subr.mxu0 %v502
        %768 = vmatpush1.msra.mxu0 %v501
        %769 = vmatprep.subr.mxu0 %v500
        %770 = vmatpush1.msra.mxu0 %v499
        %771 = vmatprep.subr.mxu0 %v498
        %772 = vmatpush1.msra.mxu0 %v497
        %773 = vmatprep.subr.mxu0 %v496
        %774 = vmatpush1.msra.mxu0 %v495
        %775 = vmatprep.subr.mxu0 %v494
        %776 = vmatpush1.msra.mxu0 %v493
        %777 = vmatprep.subr.mxu0 %v492
        %778 = vmatpush1.msra.mxu0 %v491
        %779 = vmatprep.subr.mxu0 0.0
        %780 = vmatpush2.msra.mxu0 0.0
        %781 = vmatprep.subr.mxu0 0.0
        %782 = vmatpush2.msra.mxu0 0.0
        %783 = vmatprep.subr.mxu0 0.0
        %784 = vmatpush2.msra.mxu0 0.0
        %785 = vmatprep.subr.mxu0 0.0
        %786 = vmatpush2.msra.mxu0 0.0
        %787 = vmatprep.subr.mxu0 0.0
        %788 = vmatpush2.msra.mxu0 0.0
        %789 = vmatprep.subr.mxu0 0.0
        %790 = vmatpush2.msra.mxu0 0.0
        %791 = vmatprep.subr.mxu0 0.0
        %792 = vmatpush2.msra.mxu0 0.0
        %793 = vmatprep.subr.mxu0 0.0
        %794 = vmatpush2.msra.mxu0 0.0
        %795 = vmatprep.subr.mxu0 0.0
        %796 = vmatpush2.msra.mxu0 0.0
        %797 = vmatprep.subr.mxu0 0.0
        %798 = vmatpush2.msra.mxu0 0.0
        %799 = vmatprep.subr.mxu0 0.0
        %800 = vmatpush2.msra.mxu0 0.0
        %801 = vmatprep.subr.mxu0 0.0
        %802 = vmatpush2.msra.mxu0 0.0
        %803 = vmatprep.subr.mxu0 0.0
        %804 = vmatpush2.msra.mxu0 0.0
        %805 = vmatprep.subr.mxu0 0.0
        %806 = vmatpush2.msra.mxu0 0.0
        %807 = vmatprep.subr.mxu0 0.0
        %808 = vmatpush2.msra.mxu0 0.0
        %809 = vmatprep.subr.mxu0 0.0
        %810 = vmatpush2.msra.mxu0 0.0
        %811 = vmatprep.mubr.f32.mxu0 0.0
        %812 = vmatmul.mubr.f32.gmra.mxu0 %v523
        %v813 = vpop.f32.mrf.mxu0
        %v814 = vadd.f32 %v590, %v813
        %v815 = vpop.f32.mrf.mxu0
        %v816 = vadd.f32 %v590, %v815
        %817 = vmatprep.mubr.f32.mxu0 0.0
        %818 = vmatmul.mubr.f32.gmra.mxu0 %v524
        %v819 = vpop.f32.mrf.mxu0
        %v820 = vadd.f32 %v595, %v819
        %v821 = vpop.f32.mrf.mxu0
        %v822 = vadd.f32 %v595, %v821
        %823 = vmatprep.mubr.f32.mxu0 0.0
        %824 = vmatmul.mubr.f32.gmra.mxu0 %v525
        %v825 = vpop.f32.mrf.mxu0
        %v826 = vadd.f32 %v600, %v825
        %v827 = vpop.f32.mrf.mxu0
        %v828 = vadd.f32 %v600, %v827
        %829 = vmatprep.mubr.f32.mxu0 0.0
        %830 = vmatmul.mubr.f32.gmra.mxu0 %v526
        %v831 = vpop.f32.mrf.mxu0
        %v832 = vadd.f32 %v605, %v831
        %v833 = vpop.f32.mrf.mxu0
        %v834 = vadd.f32 %v605, %v833
        %835 = vmatprep.mubr.f32.mxu0 0.0
        %836 = vmatmul.mubr.f32.gmra.mxu0 %v527
        %v837 = vpop.f32.mrf.mxu0
        %v838 = vadd.f32 %v610, %v837
        %v839 = vpop.f32.mrf.mxu0
        %v840 = vadd.f32 %v610, %v839
        %841 = vmatprep.mubr.f32.mxu0 0.0
        %842 = vmatmul.mubr.f32.gmra.mxu0 %v528
        %v843 = vpop.f32.mrf.mxu0
        %v844 = vadd.f32 %v615, %v843
        %v845 = vpop.f32.mrf.mxu0
        %v846 = vadd.f32 %v615, %v845
        %847 = vmatprep.mubr.f32.mxu0 0.0
        %848 = vmatmul.mubr.f32.gmra.mxu0 %v529
        %v849 = vpop.f32.mrf.mxu0
        %v850 = vadd.f32 %v620, %v849
        %v851 = vpop.f32.mrf.mxu0
        %v852 = vadd.f32 %v620, %v851
        %853 = vmatprep.mubr.f32.mxu0 0.0
        %854 = vmatmul.mubr.f32.gmra.mxu0 %v530
        %v855 = vpop.f32.mrf.mxu0
        %v856 = vadd.f32 %v625, %v855
        %v857 = vpop.f32.mrf.mxu0
        %v858 = vadd.f32 %v625, %v857
        %859 = vmatprep.mubr.f32.mxu0 0.0
        %860 = vmatmul.mubr.f32.gmra.mxu0 %v531
        %v861 = vpop.f32.mrf.mxu0
        %v862 = vadd.f32 %v630, %v861
        %v863 = vpop.f32.mrf.mxu0
        %v864 = vadd.f32 %v630, %v863
        %865 = vmatprep.mubr.f32.mxu0 0.0
        %866 = vmatmul.mubr.f32.gmra.mxu0 %v532
        %v867 = vpop.f32.mrf.mxu0
        %v868 = vadd.f32 %v635, %v867
        %v869 = vpop.f32.mrf.mxu0
        %v870 = vadd.f32 %v635, %v869
        %871 = vmatprep.mubr.f32.mxu0 0.0
        %872 = vmatmul.mubr.f32.gmra.mxu0 %v533
        %v873 = vpop.f32.mrf.mxu0
        %v874 = vadd.f32 %v640, %v873
        %v875 = vpop.f32.mrf.mxu0
        %v876 = vadd.f32 %v640, %v875
        %877 = vmatprep.mubr.f32.mxu0 0.0
        %878 = vmatmul.mubr.f32.gmra.mxu0 %v534
        %v879 = vpop.f32.mrf.mxu0
        %v880 = vadd.f32 %v645, %v879
        %v881 = vpop.f32.mrf.mxu0
        %v882 = vadd.f32 %v645, %v881
        %883 = vmatprep.mubr.f32.mxu0 0.0
        %884 = vmatmul.mubr.f32.gmra.mxu0 %v535
        %v885 = vpop.f32.mrf.mxu0
        %v886 = vadd.f32 %v650, %v885
        %v887 = vpop.f32.mrf.mxu0
        %v888 = vadd.f32 %v650, %v887
        %889 = vmatprep.mubr.f32.mxu0 0.0
        %890 = vmatmul.mubr.f32.gmra.mxu0 %v536
        %v891 = vpop.f32.mrf.mxu0
        %v892 = vadd.f32 %v655, %v891
        %v893 = vpop.f32.mrf.mxu0
        %v894 = vadd.f32 %v655, %v893
        %895 = vmatprep.mubr.f32.mxu0 0.0
        %896 = vmatmul.mubr.f32.gmra.mxu0 %v537
        %v897 = vpop.f32.mrf.mxu0
        %v898 = vadd.f32 %v660, %v897
        %v899 = vpop.f32.mrf.mxu0
        %v900 = vadd.f32 %v660, %v899
        %901 = vmatprep.mubr.f32.mxu0 0.0
        %902 = vmatmul.mubr.f32.gmra.mxu0 %v538
        %v903 = vpop.f32.mrf.mxu0
        %v904 = vadd.f32 %v665, %v903
        %v905 = vpop.f32.mrf.mxu0
        %v906 = vadd.f32 %v665, %v905
        %907 = vmatprep.mubr.f32.mxu0 0.0
        %908 = vmatmul.mubr.f32.gmra.mxu0 %v539
        %v909 = vpop.f32.mrf.mxu0
        %v910 = vadd.f32 %v670, %v909
        %v911 = vpop.f32.mrf.mxu0
        %v912 = vadd.f32 %v670, %v911
        %913 = vmatprep.mubr.f32.mxu0 0.0
        %914 = vmatmul.mubr.f32.gmra.mxu0 %v540
        %v915 = vpop.f32.mrf.mxu0
        %v916 = vadd.f32 %v675, %v915
        %v917 = vpop.f32.mrf.mxu0
        %v918 = vadd.f32 %v675, %v917
        %919 = vmatprep.mubr.f32.mxu0 0.0
        %920 = vmatmul.mubr.f32.gmra.mxu0 %v541
        %v921 = vpop.f32.mrf.mxu0
        %v922 = vadd.f32 %v680, %v921
        %v923 = vpop.f32.mrf.mxu0
        %v924 = vadd.f32 %v680, %v923
        %925 = vmatprep.mubr.f32.mxu0 0.0
        %926 = vmatmul.mubr.f32.gmra.mxu0 %v542
        %v927 = vpop.f32.mrf.mxu0
        %v928 = vadd.f32 %v685, %v927
        %v929 = vpop.f32.mrf.mxu0
        %v930 = vadd.f32 %v685, %v929
        %931 = vmatprep.mubr.f32.mxu0 0.0
        %932 = vmatmul.mubr.f32.gmra.mxu0 %v543
        %v933 = vpop.f32.mrf.mxu0
        %v934 = vadd.f32 %v690, %v933
        %v935 = vpop.f32.mrf.mxu0
        %v936 = vadd.f32 %v690, %v935
        %937 = vmatprep.mubr.f32.mxu0 0.0
        %938 = vmatmul.mubr.f32.gmra.mxu0 %v544
        %v939 = vpop.f32.mrf.mxu0
        %v940 = vadd.f32 %v695, %v939
        %v941 = vpop.f32.mrf.mxu0
        %v942 = vadd.f32 %v695, %v941
        %943 = vmatprep.mubr.f32.mxu0 0.0
        %944 = vmatmul.mubr.f32.gmra.mxu0 %v545
        %v945 = vpop.f32.mrf.mxu0
        %v946 = vadd.f32 %v700, %v945
        %v947 = vpop.f32.mrf.mxu0
        %v948 = vadd.f32 %v700, %v947
        %949 = vmatprep.mubr.f32.mxu0 0.0
        %950 = vmatmul.mubr.f32.gmra.mxu0 %v546
        %v951 = vpop.f32.mrf.mxu0
        %v952 = vadd.f32 %v705, %v951
        %v953 = vpop.f32.mrf.mxu0
        %v954 = vadd.f32 %v705, %v953
        %955 = vmatprep.mubr.f32.mxu0 0.0
        %956 = vmatmul.mubr.f32.gmra.mxu0 %v547
        %v957 = vpop.f32.mrf.mxu0
        %v958 = vadd.f32 %v710, %v957
        %v959 = vpop.f32.mrf.mxu0
        %v960 = vadd.f32 %v710, %v959
        %961 = vmatprep.mubr.f32.mxu0 0.0
        %962 = vmatmul.mubr.f32.gmra.mxu0 %v548
        %v963 = vpop.f32.mrf.mxu0
        %v964 = vadd.f32 %v715, %v963
        %v965 = vpop.f32.mrf.mxu0
        %v966 = vadd.f32 %v715, %v965
        %967 = vmatprep.mubr.f32.mxu0 0.0
        %968 = vmatmul.mubr.f32.gmra.mxu0 %v549
        %v969 = vpop.f32.mrf.mxu0
        %v970 = vadd.f32 %v720, %v969
        %v971 = vpop.f32.mrf.mxu0
        %v972 = vadd.f32 %v720, %v971
        %973 = vmatprep.mubr.f32.mxu0 0.0
        %974 = vmatmul.mubr.f32.gmra.mxu0 %v550
        %v975 = vpop.f32.mrf.mxu0
        %v976 = vadd.f32 %v725, %v975
        %v977 = vpop.f32.mrf.mxu0
        %v978 = vadd.f32 %v725, %v977
        %979 = vmatprep.mubr.f32.mxu0 0.0
        %980 = vmatmul.mubr.f32.gmra.mxu0 %v551
        %v981 = vpop.f32.mrf.mxu0
        %v982 = vadd.f32 %v730, %v981
        %v983 = vpop.f32.mrf.mxu0
        %v984 = vadd.f32 %v730, %v983
        %985 = vmatprep.mubr.f32.mxu0 0.0
        %986 = vmatmul.mubr.f32.gmra.mxu0 %v552
        %v987 = vpop.f32.mrf.mxu0
        %v988 = vadd.f32 %v735, %v987
        %v989 = vpop.f32.mrf.mxu0
        %v990 = vadd.f32 %v735, %v989
        %991 = vmatprep.mubr.f32.mxu0 0.0
        %992 = vmatmul.mubr.f32.gmra.mxu0 %v553
        %v993 = vpop.f32.mrf.mxu0
        %v994 = vadd.f32 %v740, %v993
        %v995 = vpop.f32.mrf.mxu0
        %v996 = vadd.f32 %v740, %v995
        %997 = vmatprep.mubr.f32.mxu0 0.0
        %998 = vmatmul.mubr.f32.gmra.mxu0 %v554
        %v999 = vpop.f32.mrf.mxu0
        %v1000 = vadd.f32 %v745, %v999
        %v1001 = vpop.f32.mrf.mxu0
        %v1002 = vadd.f32 %v745, %v1001
        %1003 = vdwg.mxu0
        %v1004 = vtanh.pop %v814
        %v1005 = vtanh.pop %v816
        %v1006 = vtanh.pop %v820
        %v1007 = vtanh.pop %v822
        %v1008 = vtanh.pop %v826
        %v1009 = vtanh.pop %v828
        %v1010 = vtanh.pop %v832
        %v1011 = vtanh.pop %v834
        %v1012 = vtanh.pop %v838
        %v1013 = vtanh.pop %v840
        %v1014 = vtanh.pop %v844
        %v1015 = vtanh.pop %v846
        %v1016 = vtanh.pop %v850
        %v1017 = vtanh.pop %v852
        %v1018 = vtanh.pop %v856
        %v1019 = vtanh.pop %v858
        %v1020 = vtanh.pop %v862
        %v1021 = vtanh.pop %v864
        %v1022 = vtanh.pop %v868
        %v1023 = vtanh.pop %v870
        %v1024 = vtanh.pop %v874
        %v1025 = vtanh.pop %v876
        %v1026 = vtanh.pop %v880
        %v1027 = vtanh.pop %v882
        %v1028 = vtanh.pop %v886
        %v1029 = vtanh.pop %v888
        %v1030 = vtanh.pop %v892
        %v1031 = vtanh.pop %v894
        %v1032 = vtanh.pop %v898
        %v1033 = vtanh.pop %v900
        %v1034 = vtanh.pop %v904
        %v1035 = vtanh.pop %v906
        %v1036 = vtanh.pop %v910
        %v1037 = vtanh.pop %v912
        %v1038 = vtanh.pop %v916
        %v1039 = vtanh.pop %v918
        %v1040 = vtanh.pop %v922
        %v1041 = vtanh.pop %v924
        %v1042 = vtanh.pop %v928
        %v1043 = vtanh.pop %v930
        %v1044 = vtanh.pop %v934
        %v1045 = vtanh.pop %v936
        %v1046 = vtanh.pop %v940
        %v1047 = vtanh.pop %v942
        %v1048 = vtanh.pop %v946
        %v1049 = vtanh.pop %v948
        %v1050 = vtanh.pop %v952
        %v1051 = vtanh.pop %v954
        %v1052 = vtanh.pop %v958
        %v1053 = vtanh.pop %v960
        %v1054 = vtanh.pop %v964
        %v1055 = vtanh.pop %v966
        %v1056 = vtanh.pop %v970
        %v1057 = vtanh.pop %v972
        %v1058 = vtanh.pop %v976
        %v1059 = vtanh.pop %v978
        %v1060 = vtanh.pop %v982
        %v1061 = vtanh.pop %v984
        %v1062 = vtanh.pop %v988
        %v1063 = vtanh.pop %v990
        %v1064 = vtanh.pop %v994
        %v1065 = vtanh.pop %v996
        %v1066 = vtanh.pop %v1000
        %v1067 = vtanh.pop %v1002
        %v1068 = vadd.f32 %v1004, %v1006
        %v1069 = vadd.f32 %v1068, %v1008
        %v1070 = vadd.f32 %v1069, %v1010
        %v1071 = vadd.f32 %v1070, %v1012
        %v1072 = vadd.f32 %v1071, %v1014
        %v1073 = vadd.f32 %v1072, %v1016
        %v1074 = vadd.f32 %v1073, %v1018
        %v1075 = vadd.f32 %v1074, %v1020
        %v1076 = vadd.f32 %v1075, %v1022
        %v1077 = vadd.f32 %v1076, %v1024
        %v1078 = vadd.f32 %v1077, %v1026
        %v1079 = vadd.f32 %v1078, %v1028
        %v1080 = vadd.f32 %v1079, %v1030
        %v1081 = vadd.f32 %v1080, %v1032
        %v1082 = vadd.f32 %v1081, %v1034
        %v1083 = vadd.f32 %v1082, %v1036
        %v1084 = vadd.f32 %v1083, %v1038
        %v1085 = vadd.f32 %v1084, %v1040
        %v1086 = vadd.f32 %v1085, %v1042
        %v1087 = vadd.f32 %v1086, %v1044
        %v1088 = vadd.f32 %v1087, %v1046
        %v1089 = vadd.f32 %v1088, %v1048
        %v1090 = vadd.f32 %v1089, %v1050
        %v1091 = vadd.f32 %v1090, %v1052
        %v1092 = vadd.f32 %v1091, %v1054
        %v1093 = vadd.f32 %v1092, %v1056
        %v1094 = vadd.f32 %v1093, %v1058
        %v1095 = vadd.f32 %v1094, %v1060
        %v1096 = vadd.f32 %v1095, %v1062
        %v1097 = vadd.f32 %v1096, %v1064
        %v1098 = vadd.f32 %v1097, %v1066
        %v1099 = vrot.slane %v1098, 4
        %v1100 = vadd.f32 %v1098, %v1099
        %v1101 = vrot.slane %v1100, 2
        %v1102 = vadd.f32 %v1100, %v1101
        %v1103 = vrot.slane %v1102, 1
        %v1104 = vadd.f32 %v1102, %v1103
        %v1105 = vadd.f32 %v1005, %v1007
        %v1106 = vadd.f32 %v1105, %v1009
        %v1107 = vadd.f32 %v1106, %v1011
        %v1108 = vadd.f32 %v1107, %v1013
        %v1109 = vadd.f32 %v1108, %v1015
        %v1110 = vadd.f32 %v1109, %v1017
        %v1111 = vadd.f32 %v1110, %v1019
        %v1112 = vadd.f32 %v1111, %v1021
        %v1113 = vadd.f32 %v1112, %v1023
        %v1114 = vadd.f32 %v1113, %v1025
        %v1115 = vadd.f32 %v1114, %v1027
        %v1116 = vadd.f32 %v1115, %v1029
        %v1117 = vadd.f32 %v1116, %v1031
        %v1118 = vadd.f32 %v1117, %v1033
        %v1119 = vadd.f32 %v1118, %v1035
        %v1120 = vadd.f32 %v1119, %v1037
        %v1121 = vadd.f32 %v1120, %v1039
        %v1122 = vadd.f32 %v1121, %v1041
        %v1123 = vadd.f32 %v1122, %v1043
        %v1124 = vadd.f32 %v1123, %v1045
        %v1125 = vadd.f32 %v1124, %v1047
        %v1126 = vadd.f32 %v1125, %v1049
        %v1127 = vadd.f32 %v1126, %v1051
        %v1128 = vadd.f32 %v1127, %v1053
        %v1129 = vadd.f32 %v1128, %v1055
        %v1130 = vadd.f32 %v1129, %v1057
        %v1131 = vadd.f32 %v1130, %v1059
        %v1132 = vadd.f32 %v1131, %v1061
        %v1133 = vadd.f32 %v1132, %v1063
        %v1134 = vadd.f32 %v1133, %v1065
        %v1135 = vadd.f32 %v1134, %v1067
        %v1136 = vrot.slane %v1135, 4
        %v1137 = vadd.f32 %v1135, %v1136
        %v1138 = vrot.slane %v1137, 2
        %v1139 = vadd.f32 %v1137, %v1138
        %v1140 = vrot.slane %v1139, 1
        %v1141 = vadd.f32 %v1139, %v1140
        %v1144 = vcombine.low %v1104, %v1141
        %v1146 = vunpack.c.l.s4 1966171168
        %v1147 = vunpack.c.0.s8 %v1146
        %v1148 = vlaneseq
        %v1149 = vshrl.u32 %v1148, 7
        %v1150 = vsub.s32 %v1147, %v1149
        %v1151 = vrot.slane %v1144, %v1150
        %v1153 = vunpack.c.l.s4 1966171168
        %v1154 = vunpack.c.0.s8 %v1153
        %v1155 = vlaneseq
        %v1156 = vshrl.u32 %v1155, 7
        %v1157 = vsub.s32 %v1154, %v1156
        %v1158 = vrot.slane %v1151, %v1157
        %v1160 = vlaneseq
        %vm1161 = vcmp.ge.s32.totalorder %v1160, 0
        %vm1162 = vcmp.lt.s32.totalorder %v1160, 256
        %vm1163 = vmand %vm1161, %vm1162
        %1164 = vst.msk [vmem:[%s216] sm:$0x3] %vm1163, %v1158
        %s1165 = sand.u32 %s137, 1
        %s1166 = scalar_lea.sflag [#allocation3], %s1165
        %s1167 = sand.u32 %s137, 1
        %s1168 = smul.addr %s1167, 2
        %s1169 = scalar_lea.vmem [#allocation2], %s1168
        // Predicated region
        $region41: #{tpu_custom_call.1} parent=39 // pred_check
          %p1170 = pneg %p147
        $region42: #{tpu_custom_call.1} parent=39 // pred_check_branch
          %1172 = sbr.rel (%p1170) target = $region44
        $region43: #{tpu_custom_call.1} parent=39 // pred_region
          %s1173 = smul.u32 2, %s19
          %s1175 = ssub.s32 32, 32
          %1176 = vsyncadd %s1166, %s1175
          %s1177 = smul.addr %s1173, 16
          %s1178 = scalar_lea.hbm %s5, %s1177
          %s1180 = sshll.u32 %s1169, 4
          %s1181 = int_to_ptr.vmem [resolvable:$true] %s1180
          %1183 = dma.vmem_to_hbm [thread:$0]  %s1181, 32, %s1178, %s1166
        $region44: #{tpu_custom_call.1} parent=39 // pred_fallthru
          _
      $region40: #{tpu_custom_call.1} parent=5 // pred_fallthru
        _
      %p1184 = scmp.le.s32.totalorder 2, %s14
      // Predicated region
      $region45: #{tpu_custom_call.1} parent=5 // pred_check
        %p1185 = pneg %p1184
      $region46: #{tpu_custom_call.1} parent=5 // pred_check_branch
        %1187 = sbr.rel (%p1185) target = $region48
      $region47: #{tpu_custom_call.1} parent=5 // pred_region
        %s1188 = ssub.s32 %s14, 2
        // Predicated region
        $region49: #{tpu_custom_call.1} parent=47 // pred_check
          %p1189 = pneg %p153
        $region50: #{tpu_custom_call.1} parent=47 // pred_check_branch
          %1191 = sbr.rel (%p1189) target = $region52
        $region51: #{tpu_custom_call.1} parent=47 // pred_region
          %s1192 = sand.u32 %s138, 1
          %s1193 = scalar_lea.sflag [#allocation3], %s1192
          %s1194 = sand.u32 %s138, 1
          %s1195 = smul.addr %s1194, 2
          %s1196 = scalar_lea.vmem [#allocation2], %s1195
          %1197 = dma.done %s1193, 32
        $region52: #{tpu_custom_call.1} parent=47 // pred_fallthru
          _
      $region48: #{tpu_custom_call.1} parent=5 // pred_fallthru
        _
    $region6: #{tpu_custom_call.1} parent=1 // loop_footer
      %s18 = sadd.s32 1, %s14
    $region7: #{tpu_custom_call.1} parent=1 // loop_footer_branch
      %13 = sbr.rel target = $region3
    $region8: #{tpu_custom_call.1} parent=1 // loop_exit
      _
    %1198 = vsyncpa [#allocation3], 1
    %s1199 = scalar_lea.sflag [#allocation3], 1
    %1200 = vsyncpa %s1199, 1

</llo_original>
